<compile_context>
chip_gen: v5e
topology: v5e:2x2
jax: 0.10.0
libtpu: 0.0.40
codegen_flags: <defaults>
</compile_context>

<pallas_src>
import jax
import jax.numpy as jnp
from jax.experimental import pallas as pl
from jax.experimental.pallas import tpu as pltpu

_LANES = 128
_SUBLANES = 8


def _round_up(v, m):
    return ((v + m - 1) // m) * m


def _make_kernel(n_points, n_points_padded, point_dim):
    """Kernel closure over the static set size / point dim."""
    inv_n = 1.0 / float(n_points)

    def kernel(xt_ref, w1t_ref, b1c_ref, w2_ref, b2_ref, w3_ref, b3_ref,
               w4r_ref, b4_ref, out_ref):
        rows = xt_ref.shape[1]            # Tb * Np            (static)
        hp = w2_ref.shape[0]              # lane-padded hidden (static)
        tb = out_ref.shape[1]             # batch elems / tile (static)

        # ---- layer 1: Linear(D->H)+ReLU, feature-major on the VPU (f32) ----
        # h1[f, r] = relu(sum_d W1[d, f] * x[d, r] + b1[f]).
        # x rows are (1, rows) sublane broadcasts; the W1 columns are tiny
        # (Hp, 1) lane broadcasts hoisted out of the row dimension, so layer 1
        # does no per-row relayout work and x stays f32 end-to-end.
        h1 = None
        for d in range(point_dim):                            # static unroll
            term = w1t_ref[:, d:d + 1] * xt_ref[d:d + 1, :]   # (Hp,1)*(1,rows)
            h1 = term if h1 is None else h1 + term
        h1 = jnp.maximum(h1 + b1c_ref[...], 0.0)              # (Hp, rows) f32

        # ---- layer 2: Linear(H->H)+ReLU on the MXU (bf16 operands, f32 acc).
        # The feature-major -> row-major flip is folded into the matmul via
        # lhs.T (same style as q @ k.T in the flash-attention kernels).
        h1c = h1.astype(w2_ref.dtype)
        h2 = jnp.dot(h1c.T, w2_ref[...], preferred_element_type=jnp.float32)
        h2 = jnp.maximum(h2 + b2_ref[...], 0.0)               # (rows, Hp) f32

        # ---- set mean over the points of each batch element ----
        if n_points_padded != n_points:
            # zero the zero-padded point rows so they do not bias the mean
            ridx = jax.lax.broadcasted_iota(jnp.int32, (rows, 1), 0)
            h2 = jnp.where((ridx % n_points_padded) < n_points, h2, 0.0)
        # (Tb*Np, Hp) -> (Tb, Np, Hp): Np is a multiple of 8, so this is a pure
        # sublane-group reduce (no relayout of the large activation).
        set_feat = jnp.sum(h2.reshape(tb, n_points_padded, hp), axis=1) * inv_n

        # ---- layer 3: Linear(H->H)+ReLU on the MXU ----
        e = jnp.dot(set_feat.astype(w3_ref.dtype), w3_ref[...],
                    preferred_element_type=jnp.float32)
        e = jnp.maximum(e + b3_ref[...], 0.0)                 # (Tb, Hp) f32

        # ---- layer 4: Linear(H->1) as (1,Hp) @ (Tb,Hp).T -> lane-dense (1,Tb)
        energy = jnp.dot(w4r_ref[...], e.T,
                         preferred_element_type=jnp.float32) + b4_ref[...]

        # (1, Tb) -> (8, Tb): cheap sublane splat keeps the store a full,
        # unmasked (8,128)-aligned slab (32 B/sample of writeback vs 512 B for
        # the old (Tb,128) broadcast).  The wrapper reads sublane 0.
        out_ref[...] = jnp.broadcast_to(energy, out_ref.shape)

    return kernel


def sequential_ebm_forward(x, params, *, block_b=None, mxu_dtype=jnp.bfloat16):
    """x: (B, N, point_dim) f32 -> (B, 1) f32 energies (SequentialEBM.forward)."""
    B, N, D = x.shape
    w1, b1, w2, b2, w3, b3, w4, b4 = params
    H = w1.shape[1]
    Hp = max(_LANES, _round_up(H, _LANES))
    Np = _round_up(N, _SUBLANES)
    f32 = jnp.float32

    def pad2(a, rows, cols):
        a = a.astype(f32)
        return jnp.pad(a, ((0, rows - a.shape[0]), (0, cols - a.shape[1])))

    # Hidden dim zero-padded to 128 lanes; padded channels stay exactly zero
    # through every ReLU, so the padding is mathematically inert.
    w1t = pad2(w1, D, Hp).T                     # (Hp, D)  f32
    b1c = pad2(b1.reshape(1, -1), 1, Hp).T      # (Hp, 1)  f32
    w2p = pad2(w2, Hp, Hp).astype(mxu_dtype)    # (Hp, Hp) MXU operand
    b2p = pad2(b2.reshape(1, -1), 1, Hp)        # (1, Hp)  f32
    w3p = pad2(w3, Hp, Hp).astype(mxu_dtype)    # (Hp, Hp) MXU operand
    b3p = pad2(b3.reshape(1, -1), 1, Hp)        # (1, Hp)  f32
    w4r = pad2(w4.reshape(-1, 1), Hp, 1).T      # (1, Hp)  f32
    b4p = b4.reshape(1, 1).astype(f32)          # (1, 1)   f32

    # ---- batch tile: target ~8K point-rows per grid step (amortizes the
    # ~0.35us/step pipeline overhead, keeps intermediates well inside v7x's
    # 64 MiB VMEM), and cap at ceil(B/2) for medium batches so both v7x
    # TensorCores get at least one grid step.
    if block_b is None:
        target_rows = 8192
        tb = max(1, target_rows // Np)
        tb = max(_LANES, (tb // _LANES) * _LANES)     # keep lane dims 128-aligned
        half = -(-B // 2)
        if B > 2 * _LANES and tb > half:
            tb = max(_LANES, -(-half // _LANES) * _LANES)
        block_b = B if tb >= B else tb
    # TODO(synk): sets with very many points (block_b*Np > ~32K rows) should
    # chunk the point dimension with an accumulator grid axis instead.

    Tb = block_b
    num_blocks = -(-B // Tb)
    B_pad = num_blocks * Tb
    R = Tb * Np

    # x: (B, N, D) -> zero-pad batch/points -> lane-dense transposed stream
    # (D, B_pad*Np).  The old (rows, 2) tiles DMAed ~64x more bytes than data.
    xp = x.astype(f32)
    if B_pad != B or Np != N:
        xp = jnp.pad(xp, ((0, B_pad - B), (0, Np - N), (0, 0)))
    x_t = xp.reshape(B_pad * Np, D).T           # (D, B_pad*Np) f32

    def const_spec(a):                          # VMEM-resident across the grid
        return pl.BlockSpec(a.shape, lambda i: (0, 0))

    flops = 2 * B * N * (D * H + H * H) + 2 * B * (H * H + H)
    bytes_accessed = (B * N * D + B) * 4 + sum(int(p.size) for p in params) * 4

    out_packed = pl.pallas_call(
        _make_kernel(N, Np, D),
        out_shape=jax.ShapeDtypeStruct((_SUBLANES, B_pad), f32),
        grid=(num_blocks,),
        in_specs=[
            pl.BlockSpec((D, R), lambda i: (0, i)),     # streamed x tiles
            const_spec(w1t), const_spec(b1c),
            const_spec(w2p), const_spec(b2p),
            const_spec(w3p), const_spec(b3p),
            const_spec(w4r), const_spec(b4p),
        ],
        out_specs=pl.BlockSpec((_SUBLANES, Tb), lambda i: (0, i)),
        compiler_params=pltpu.CompilerParams(
            dimension_semantics=("parallel",),      # megacore-shard the batch
            vmem_limit_bytes=48 * 1024 * 1024,      # fits v7x (64 MiB) and v5e/v6e
        ),
        cost_estimate=pl.CostEstimate(
            flops=flops, transcendentals=0, bytes_accessed=bytes_accessed),
    )(x_t, w1t, b1c, w2p, b2p, w3p, b3p, w4r, b4p)

    return out_packed[0, :B].reshape(B, 1)


def init_params(key, point_dim=2, hidden=64):
    ks = jax.random.split(key, 8)
    s = 0.1
    w1 = s * jax.random.normal(ks[0], (point_dim, hidden), jnp.float32)
    b1 = s * jax.random.normal(ks[1], (1, hidden), jnp.float32)
    w2 = s * jax.random.normal(ks[2], (hidden, hidden), jnp.float32)
    b2 = s * jax.random.normal(ks[3], (1, hidden), jnp.float32)
    w3 = s * jax.random.normal(ks[4], (hidden, hidden), jnp.float32)
    b3 = s * jax.random.normal(ks[5], (1, hidden), jnp.float32)
    w4 = s * jax.random.normal(ks[6], (hidden, 1), jnp.float32)
    b4 = s * jax.random.normal(ks[7], (1, 1), jnp.float32)
    return (w1, b1, w2, b2, w3, b3, w4, b4)


def reference_forward(x, params):
    """Pure-JAX reference mirroring the PyTorch forward exactly."""
    w1, b1, w2, b2, w3, b3, w4, b4 = params
    B = x.shape[0]
    pf = x.reshape(-1, x.shape[-1])
    pf = jnp.maximum(pf @ w1 + b1, 0.0)
    pf = jnp.maximum(pf @ w2 + b2, 0.0)
    pf = pf.reshape(B, -1, pf.shape[-1])
    sf = pf.mean(axis=1)
    e = jnp.maximum(sf @ w3 + b3, 0.0)
    return e @ w4 + b4


if __name__ == "__main__":
    key = jax.random.PRNGKey(0)
    k_x, k_p = jax.random.split(key)

    B, N, D, H = 2, 8, 2, 64          # batch=2, 8 points per set, point_dim=2
    x = jax.random.normal(k_x, (B, N, D), jnp.float32)
    params = init_params(k_p, point_dim=D, hidden=H)

    ref = reference_forward(x, params)

    # Default (bf16 MXU operands, f32 accumulation): fast path on all gens.
    energy = jax.block_until_ready(sequential_ebm_forward(x, params))
    assert energy.shape == (B, 1)
    assert jnp.allclose(energy, ref, atol=2e-2, rtol=2e-2), (energy, ref)

    # f32 MXU path: exact-precision check against the XLA reference.
    energy_f32 = jax.block_until_ready(
        sequential_ebm_forward(x, params, mxu_dtype=jnp.float32))
    assert jnp.allclose(energy_f32, ref, atol=1e-4, rtol=1e-4), (energy_f32, ref)

    print("KERNEL_OK")
</pallas_src>

<mosaic_0001>
module attributes {stable_mosaic.version = 11 : i64} {
  func.func @kernel(%arg0: i32, %arg1: memref<2x16xf32, #tpu.memory_space<vmem>>, %arg2: memref<128x2xf32, #tpu.memory_space<vmem>>, %arg3: memref<128x1xf32, #tpu.memory_space<vmem>>, %arg4: memref<128x128xbf16, #tpu.memory_space<vmem>>, %arg5: memref<1x128xf32, #tpu.memory_space<vmem>>, %arg6: memref<128x128xbf16, #tpu.memory_space<vmem>>, %arg7: memref<1x128xf32, #tpu.memory_space<vmem>>, %arg8: memref<1x128xf32, #tpu.memory_space<vmem>>, %arg9: memref<1x1xf32, #tpu.memory_space<vmem>>, %arg10: memref<8x2xf32, #tpu.memory_space<vmem>>) attributes {dimension_semantics = [#tpu.dimension_semantics<parallel>], iteration_bounds = array<i64: 1>, scalar_prefetch = 0 : i64, scratch_operands = 0 : i64, tpu.core_type = #tpu.core_type<tc>, window_params = [{transform_indices = @transform_0, window_bounds = array<i64: 2, 16>}, {pipeline_mode = #tpu.pipeline_mode<synchronous>, transform_indices = @transform_1, window_bounds = array<i64: 128, 2>}, {pipeline_mode = #tpu.pipeline_mode<synchronous>, transform_indices = @transform_2, window_bounds = array<i64: 128, 1>}, {pipeline_mode = #tpu.pipeline_mode<synchronous>, transform_indices = @transform_3, window_bounds = array<i64: 128, 128>}, {pipeline_mode = #tpu.pipeline_mode<synchronous>, transform_indices = @transform_4, window_bounds = array<i64: 1, 128>}, {pipeline_mode = #tpu.pipeline_mode<synchronous>, transform_indices = @transform_5, window_bounds = array<i64: 128, 128>}, {pipeline_mode = #tpu.pipeline_mode<synchronous>, transform_indices = @transform_6, window_bounds = array<i64: 1, 128>}, {pipeline_mode = #tpu.pipeline_mode<synchronous>, transform_indices = @transform_7, window_bounds = array<i64: 1, 128>}, {pipeline_mode = #tpu.pipeline_mode<synchronous>, transform_indices = @transform_8, window_bounds = array<i64: 1, 1>}, {transform_indices = @transform_9, window_bounds = array<i64: 8, 2>}]} {
    %c0 = arith.constant 0 : index
    %c0_0 = arith.constant 0 : index
    %0 = vector.load %arg2[%c0, %c0_0] : memref<128x2xf32, #tpu.memory_space<vmem>>, vector<128x1xf32>
    %c0_1 = arith.constant 0 : index
    %c0_2 = arith.constant 0 : index
    %1 = vector.load %arg1[%c0_1, %c0_2] : memref<2x16xf32, #tpu.memory_space<vmem>>, vector<1x16xf32>
    %2 = vector.broadcast %0 : vector<128x1xf32> to vector<128x16xf32>
    %3 = vector.broadcast %1 : vector<1x16xf32> to vector<128x16xf32>
    %4 = arith.mulf %2, %3 : vector<128x16xf32>
    %c0_3 = arith.constant 0 : index
    %c1 = arith.constant 1 : index
    %5 = vector.load %arg2[%c0_3, %c1] : memref<128x2xf32, #tpu.memory_space<vmem>>, vector<128x1xf32>
    %c1_4 = arith.constant 1 : index
    %c0_5 = arith.constant 0 : index
    %6 = vector.load %arg1[%c1_4, %c0_5] : memref<2x16xf32, #tpu.memory_space<vmem>>, vector<1x16xf32>
    %7 = vector.broadcast %5 : vector<128x1xf32> to vector<128x16xf32>
    %8 = vector.broadcast %6 : vector<1x16xf32> to vector<128x16xf32>
    %9 = arith.mulf %7, %8 : vector<128x16xf32>
    %10 = arith.addf %4, %9 : vector<128x16xf32>
    %c0_6 = arith.constant 0 : index
    %c0_7 = arith.constant 0 : index
    %11 = vector.load %arg3[%c0_6, %c0_7] : memref<128x1xf32, #tpu.memory_space<vmem>>, vector<128x1xf32>
    %12 = vector.broadcast %11 : vector<128x1xf32> to vector<128x16xf32>
    %13 = arith.addf %10, %12 : vector<128x16xf32>
    %cst = arith.constant 0.000000e+00 : f32
    %14 = vector.broadcast %cst : f32 to vector<128x16xf32>
    %15 = arith.maximumf %13, %14 : vector<128x16xf32>
    %16 = arith.truncf %15 : vector<128x16xf32> to vector<128x16xbf16>
    %17 = tpu.transpose %16, [1, 0] : vector<128x16xbf16> -> vector<16x128xbf16>
    %c0_8 = arith.constant 0 : index
    %c0_9 = arith.constant 0 : index
    %18 = vector.load %arg4[%c0_8, %c0_9] : memref<128x128xbf16, #tpu.memory_space<vmem>>, vector<128x128xbf16>
    %cst_10 = arith.constant dense<0.000000e+00> : vector<16x128xf32>
    %19 = tpu.matmul %17, %18, %cst_10 {dimension_numbers = #tpu.dot_dimension_numbers<[1], [0], [0], [1], [0, 0, 1, 1], [], []>} : vector<16x128xbf16>, vector<128x128xbf16>, vector<16x128xf32> -> vector<16x128xf32>
    %c0_11 = arith.constant 0 : index
    %c0_12 = arith.constant 0 : index
    %20 = vector.load %arg5[%c0_11, %c0_12] : memref<1x128xf32, #tpu.memory_space<vmem>>, vector<1x128xf32>
    %21 = vector.broadcast %20 : vector<1x128xf32> to vector<16x128xf32>
    %22 = arith.addf %19, %21 : vector<16x128xf32>
    %cst_13 = arith.constant 0.000000e+00 : f32
    %23 = vector.broadcast %cst_13 : f32 to vector<16x128xf32>
    %24 = arith.maximumf %22, %23 : vector<16x128xf32>
    %25 = vector.shape_cast %24 : vector<16x128xf32> to vector<2x8x128xf32>
    %cst_14 = arith.constant dense<0.000000e+00> : vector<2x128xf32>
    %26 = vector.multi_reduction <add>, %25, %cst_14 [1] : vector<2x8x128xf32> to vector<2x128xf32>
    %cst_15 = arith.constant 1.250000e-01 : f32
    %27 = vector.broadcast %cst_15 : f32 to vector<2x128xf32>
    %28 = arith.mulf %26, %27 : vector<2x128xf32>
    %29 = arith.truncf %28 : vector<2x128xf32> to vector<2x128xbf16>
    %c0_16 = arith.constant 0 : index
    %c0_17 = arith.constant 0 : index
    %30 = vector.load %arg6[%c0_16, %c0_17] : memref<128x128xbf16, #tpu.memory_space<vmem>>, vector<128x128xbf16>
    %cst_18 = arith.constant dense<0.000000e+00> : vector<2x128xf32>
    %31 = tpu.matmul %29, %30, %cst_18 {dimension_numbers = #tpu.dot_dimension_numbers<[1], [0], [0], [1], [0, 0, 1, 1], [], []>} : vector<2x128xbf16>, vector<128x128xbf16>, vector<2x128xf32> -> vector<2x128xf32>
    %c0_19 = arith.constant 0 : index
    %c0_20 = arith.constant 0 : index
    %32 = vector.load %arg7[%c0_19, %c0_20] : memref<1x128xf32, #tpu.memory_space<vmem>>, vector<1x128xf32>
    %33 = vector.broadcast %32 : vector<1x128xf32> to vector<2x128xf32>
    %34 = arith.addf %31, %33 : vector<2x128xf32>
    %cst_21 = arith.constant 0.000000e+00 : f32
    %35 = vector.broadcast %cst_21 : f32 to vector<2x128xf32>
    %36 = arith.maximumf %34, %35 : vector<2x128xf32>
    %c0_22 = arith.constant 0 : index
    %c0_23 = arith.constant 0 : index
    %37 = vector.load %arg8[%c0_22, %c0_23] : memref<1x128xf32, #tpu.memory_space<vmem>>, vector<1x128xf32>
    %38 = tpu.transpose %36, [1, 0] : vector<2x128xf32> -> vector<128x2xf32>
    %cst_24 = arith.constant dense<0.000000e+00> : vector<1x2xf32>
    %39 = tpu.matmul %37, %38, %cst_24 {dimension_numbers = #tpu.dot_dimension_numbers<[1], [0], [0], [1], [0, 0, 1, 1], [], []>} : vector<1x128xf32>, vector<128x2xf32>, vector<1x2xf32> -> vector<1x2xf32>
    %c0_25 = arith.constant 0 : index
    %c0_26 = arith.constant 0 : index
    %40 = vector.load %arg9[%c0_25, %c0_26] : memref<1x1xf32, #tpu.memory_space<vmem>>, vector<1x1xf32>
    %41 = vector.broadcast %40 : vector<1x1xf32> to vector<1x2xf32>
    %42 = arith.addf %39, %41 : vector<1x2xf32>
    %43 = vector.shape_cast %42 : vector<1x2xf32> to vector<1x2xf32>
    %44 = vector.broadcast %43 : vector<1x2xf32> to vector<8x2xf32>
    %c0_27 = arith.constant 0 : index
    %c0_28 = arith.constant 0 : index
    %45 = vector.load %arg10[%c0_27, %c0_28] : memref<8x2xf32, #tpu.memory_space<vmem>>, vector<8x2xf32>
    tpu.vector_store %arg10[%c0_27, %c0_28], %44 {strides = array<i32>} : memref<8x2xf32, #tpu.memory_space<vmem>>, vector<8x2xf32>,
    return
  }
  func.func @transform_0(%arg0: i32) -> (i32, i32) {
    %c0_i32 = arith.constant 0 : i32
    %c0_i32_0 = arith.constant 0 : i32
    return %c0_i32, %arg0 : i32, i32
  }
  func.func @transform_1(%arg0: i32) -> (i32, i32) {
    %c0_i32 = arith.constant 0 : i32
    %c0_i32_0 = arith.constant 0 : i32
    %c0_i32_1 = arith.constant 0 : i32
    return %c0_i32, %c0_i32_0 : i32, i32
  }
  func.func @transform_2(%arg0: i32) -> (i32, i32) {
    %c0_i32 = arith.constant 0 : i32
    %c0_i32_0 = arith.constant 0 : i32
    %c0_i32_1 = arith.constant 0 : i32
    return %c0_i32, %c0_i32_0 : i32, i32
  }
  func.func @transform_3(%arg0: i32) -> (i32, i32) {
    %c0_i32 = arith.constant 0 : i32
    %c0_i32_0 = arith.constant 0 : i32
    %c0_i32_1 = arith.constant 0 : i32
    return %c0_i32, %c0_i32_0 : i32, i32
  }
  func.func @transform_4(%arg0: i32) -> (i32, i32) {
    %c0_i32 = arith.constant 0 : i32
    %c0_i32_0 = arith.constant 0 : i32
    %c0_i32_1 = arith.constant 0 : i32
    return %c0_i32, %c0_i32_0 : i32, i32
  }
  func.func @transform_5(%arg0: i32) -> (i32, i32) {
    %c0_i32 = arith.constant 0 : i32
    %c0_i32_0 = arith.constant 0 : i32
    %c0_i32_1 = arith.constant 0 : i32
    return %c0_i32, %c0_i32_0 : i32, i32
  }
  func.func @transform_6(%arg0: i32) -> (i32, i32) {
    %c0_i32 = arith.constant 0 : i32
    %c0_i32_0 = arith.constant 0 : i32
    %c0_i32_1 = arith.constant 0 : i32
    return %c0_i32, %c0_i32_0 : i32, i32
  }
  func.func @transform_7(%arg0: i32) -> (i32, i32) {
    %c0_i32 = arith.constant 0 : i32
    %c0_i32_0 = arith.constant 0 : i32
    %c0_i32_1 = arith.constant 0 : i32
    return %c0_i32, %c0_i32_0 : i32, i32
  }
  func.func @transform_8(%arg0: i32) -> (i32, i32) {
    %c0_i32 = arith.constant 0 : i32
    %c0_i32_0 = arith.constant 0 : i32
    %c0_i32_1 = arith.constant 0 : i32
    return %c0_i32, %c0_i32_0 : i32, i32
  }
  func.func @transform_9(%arg0: i32) -> (i32, i32) {
    %c0_i32 = arith.constant 0 : i32
    %c0_i32_0 = arith.constant 0 : i32
    return %c0_i32, %arg0 : i32, i32
  }
}

</mosaic_0001>

<llo_original>
// kernel: tpu_custom_call.1
$region0: #{tpu_custom_call.1}
  #allocation0 [shape = 'u32[]', space=smem, size = 0x4, offset = 0x4, fixed_abs, tag = 'smem constant byte address 0x4 - core index']
  #allocation1 [shape = 'u32[72,128]{1,0:T(1,128)}', space=vmem, size = 0x9000, scoped, tag = 'internal scratch']
  #allocation2 [shape = 'f32[1,1]{1,0:T(1,128)S(1)}', space=vmem, size = 0x200, scoped, tag = 'scoped memory for tpu_custom_call.1']
  %s0 = inlined_call_operand.vmem [shape: f32[2,16], index: 0, kind: input, shape index: {}]
  %s1 = inlined_call_operand.vmem [shape: f32[128,2], index: 1, kind: input, shape index: {}]
  %s2 = inlined_call_operand.vmem [shape: f32[128,1], index: 2, kind: input, shape index: {}]
  %s3 = inlined_call_operand.vmem [shape: bf16[128,128], index: 3, kind: input, shape index: {}]
  %s4 = inlined_call_operand.vmem [shape: f32[1,128], index: 4, kind: input, shape index: {}]
  %s5 = inlined_call_operand.vmem [shape: bf16[128,128], index: 5, kind: input, shape index: {}]
  %s6 = inlined_call_operand.vmem [shape: f32[1,128], index: 6, kind: input, shape index: {}]
  %s7 = inlined_call_operand.vmem [shape: f32[1,128], index: 7, kind: input, shape index: {}]
  %s8 = inlined_call_operand.<no memory space> [shape: f32[1,1], index: 8, kind: input, shape index: {}]
  %s9 = inlined_call_operand.vmem [shape: f32[8,2], index: 9, kind: output, shape index: {}]
  %s10 = sld [smem:[#allocation0]]
  $region46: #{tpu_custom_call.1} parent=0
    _
  %s12 = ssub.s32 1, %s10
  %s13 = scalar_select 0, %s12, %s10
  %v14 = vstv %s8
  %15 = vst [vmem:[#allocation2] sm:$0x1] %v14
  // Predicated region
  $region2: #{tpu_custom_call.1} parent=0 // pred_check
    _
  $region3: #{tpu_custom_call.1} parent=0 // pred_check_branch
    %17 = sbr.rel (0) target = $region5
  $region4: #{tpu_custom_call.1} parent=0 // pred_region
    _
  $region5: #{tpu_custom_call.1} parent=0 // pred_fallthru
    _
  // Predicated region
  $region6: #{tpu_custom_call.1} parent=0 // pred_check
    _
  $region7: #{tpu_custom_call.1} parent=0 // pred_check_branch
    %19 = sbr.rel (0) target = $region9
  $region8: #{tpu_custom_call.1} parent=0 // pred_region
    _
  $region9: #{tpu_custom_call.1} parent=0 // pred_fallthru
    _
  // Predicated region
  $region10: #{tpu_custom_call.1} parent=0 // pred_check
    _
  $region11: #{tpu_custom_call.1} parent=0 // pred_check_branch
    %21 = sbr.rel (0) target = $region13
  $region12: #{tpu_custom_call.1} parent=0 // pred_region
    _
  $region13: #{tpu_custom_call.1} parent=0 // pred_fallthru
    _
  // Predicated region
  $region14: #{tpu_custom_call.1} parent=0 // pred_check
    _
  $region15: #{tpu_custom_call.1} parent=0 // pred_check_branch
    %23 = sbr.rel (0) target = $region17
  $region16: #{tpu_custom_call.1} parent=0 // pred_region
    _
  $region17: #{tpu_custom_call.1} parent=0 // pred_fallthru
    _
  // Predicated region
  $region18: #{tpu_custom_call.1} parent=0 // pred_check
    _
  $region19: #{tpu_custom_call.1} parent=0 // pred_check_branch
    %25 = sbr.rel (0) target = $region21
  $region20: #{tpu_custom_call.1} parent=0 // pred_region
    _
  $region21: #{tpu_custom_call.1} parent=0 // pred_fallthru
    _
  // Predicated region
  $region22: #{tpu_custom_call.1} parent=0 // pred_check
    _
  $region23: #{tpu_custom_call.1} parent=0 // pred_check_branch
    %27 = sbr.rel (0) target = $region25
  $region24: #{tpu_custom_call.1} parent=0 // pred_region
    _
  $region25: #{tpu_custom_call.1} parent=0 // pred_fallthru
    _
  // Predicated region
  $region26: #{tpu_custom_call.1} parent=0 // pred_check
    _
  $region27: #{tpu_custom_call.1} parent=0 // pred_check_branch
    %29 = sbr.rel (0) target = $region29
  $region28: #{tpu_custom_call.1} parent=0 // pred_region
    _
  $region29: #{tpu_custom_call.1} parent=0 // pred_fallthru
    _
  // Predicated region
  $region30: #{tpu_custom_call.1} parent=0 // pred_check
    _
  $region31: #{tpu_custom_call.1} parent=0 // pred_check_branch
    %31 = sbr.rel (0) target = $region33
  $region32: #{tpu_custom_call.1} parent=0 // pred_region
    _
  $region33: #{tpu_custom_call.1} parent=0 // pred_fallthru
    _
  // Predicated region
  $region34: #{tpu_custom_call.1} parent=0 // pred_check
    _
  $region35: #{tpu_custom_call.1} parent=0 // pred_check_branch
    %33 = sbr.rel (0) target = $region37
  $region36: #{tpu_custom_call.1} parent=0 // pred_region
    _
  $region37: #{tpu_custom_call.1} parent=0 // pred_fallthru
    _
  %v34 = vld [vmem:[%s1] sm:$0xff]
  %v35 = vld [vmem:[%s1 + $0x8] sm:$0xff]
  %v36 = vld [vmem:[%s1 + $0x10] sm:$0xff]
  %v37 = vld [vmem:[%s1 + $0x18] sm:$0xff]
  %v38 = vld [vmem:[%s1 + $0x20] sm:$0xff]
  %v39 = vld [vmem:[%s1 + $0x28] sm:$0xff]
  %v40 = vld [vmem:[%s1 + $0x30] sm:$0xff]
  %v41 = vld [vmem:[%s1 + $0x38] sm:$0xff]
  %v42 = vld [vmem:[%s1 + $0x40] sm:$0xff]
  %v43 = vld [vmem:[%s1 + $0x48] sm:$0xff]
  %v44 = vld [vmem:[%s1 + $0x50] sm:$0xff]
  %v45 = vld [vmem:[%s1 + $0x58] sm:$0xff]
  %v46 = vld [vmem:[%s1 + $0x60] sm:$0xff]
  %v47 = vld [vmem:[%s1 + $0x68] sm:$0xff]
  %v48 = vld [vmem:[%s1 + $0x70] sm:$0xff]
  %v49 = vld [vmem:[%s1 + $0x78] sm:$0xff]
  %v50 = vld [vmem:[%s0] sm:$0x1]
  %52 = vset.pattern.permute.xlu0 0
  %53 = vperm.xlu0 %52, %v34
  %v54 = vpop.permute.xlu0 %53
  %57 = vset.pattern.permute.xlu0 0
  %58 = vperm.xlu0 %57, %v35
  %v59 = vpop.permute.xlu0 %58
  %62 = vset.pattern.permute.xlu0 0
  %63 = vperm.xlu0 %62, %v36
  %v64 = vpop.permute.xlu0 %63
  %67 = vset.pattern.permute.xlu0 0
  %68 = vperm.xlu0 %67, %v37
  %v69 = vpop.permute.xlu0 %68
  %72 = vset.pattern.permute.xlu0 0
  %73 = vperm.xlu0 %72, %v38
  %v74 = vpop.permute.xlu0 %73
  %77 = vset.pattern.permute.xlu0 0
  %78 = vperm.xlu0 %77, %v39
  %v79 = vpop.permute.xlu0 %78
  %82 = vset.pattern.permute.xlu0 0
  %83 = vperm.xlu0 %82, %v40
  %v84 = vpop.permute.xlu0 %83
  %87 = vset.pattern.permute.xlu0 0
  %88 = vperm.xlu0 %87, %v41
  %v89 = vpop.permute.xlu0 %88
  %92 = vset.pattern.permute.xlu0 0
  %93 = vperm.xlu0 %92, %v42
  %v94 = vpop.permute.xlu0 %93
  %97 = vset.pattern.permute.xlu0 0
  %98 = vperm.xlu0 %97, %v43
  %v99 = vpop.permute.xlu0 %98
  %102 = vset.pattern.permute.xlu0 0
  %103 = vperm.xlu0 %102, %v44
  %v104 = vpop.permute.xlu0 %103
  %107 = vset.pattern.permute.xlu0 0
  %108 = vperm.xlu0 %107, %v45
  %v109 = vpop.permute.xlu0 %108
  %112 = vset.pattern.permute.xlu0 0
  %113 = vperm.xlu0 %112, %v46
  %v114 = vpop.permute.xlu0 %113
  %117 = vset.pattern.permute.xlu0 0
  %118 = vperm.xlu0 %117, %v47
  %v119 = vpop.permute.xlu0 %118
  %122 = vset.pattern.permute.xlu0 0
  %123 = vperm.xlu0 %122, %v48
  %v124 = vpop.permute.xlu0 %123
  %127 = vset.pattern.permute.xlu0 0
  %128 = vperm.xlu0 %127, %v49
  %v129 = vpop.permute.xlu0 %128
  %v131 = vperm.slane %v50, 0
  %v132 = vmul.f32 %v54, %v131
  %v133 = vmul.f32 %v59, %v131
  %v134 = vmul.f32 %v64, %v131
  %v135 = vmul.f32 %v69, %v131
  %v136 = vmul.f32 %v74, %v131
  %v137 = vmul.f32 %v79, %v131
  %v138 = vmul.f32 %v84, %v131
  %v139 = vmul.f32 %v89, %v131
  %v140 = vmul.f32 %v94, %v131
  %v141 = vmul.f32 %v99, %v131
  %v142 = vmul.f32 %v104, %v131
  %v143 = vmul.f32 %v109, %v131
  %v144 = vmul.f32 %v114, %v131
  %v145 = vmul.f32 %v119, %v131
  %v146 = vmul.f32 %v124, %v131
  %v147 = vmul.f32 %v129, %v131
  %v148 = vld [vmem:[%s0 + $0x1] sm:$0x1]
  %149 = vset.pattern.permute.xlu0 1
  %150 = vperm.xlu0 %149, %v34
  %v151 = vpop.permute.xlu0 %150
  %153 = vset.pattern.permute.xlu0 1
  %154 = vperm.xlu0 %153, %v35
  %v155 = vpop.permute.xlu0 %154
  %157 = vset.pattern.permute.xlu0 1
  %158 = vperm.xlu0 %157, %v36
  %v159 = vpop.permute.xlu0 %158
  %161 = vset.pattern.permute.xlu0 1
  %162 = vperm.xlu0 %161, %v37
  %v163 = vpop.permute.xlu0 %162
  %165 = vset.pattern.permute.xlu0 1
  %166 = vperm.xlu0 %165, %v38
  %v167 = vpop.permute.xlu0 %166
  %169 = vset.pattern.permute.xlu0 1
  %170 = vperm.xlu0 %169, %v39
  %v171 = vpop.permute.xlu0 %170
  %173 = vset.pattern.permute.xlu0 1
  %174 = vperm.xlu0 %173, %v40
  %v175 = vpop.permute.xlu0 %174
  %177 = vset.pattern.permute.xlu0 1
  %178 = vperm.xlu0 %177, %v41
  %v179 = vpop.permute.xlu0 %178
  %181 = vset.pattern.permute.xlu0 1
  %182 = vperm.xlu0 %181, %v42
  %v183 = vpop.permute.xlu0 %182
  %185 = vset.pattern.permute.xlu0 1
  %186 = vperm.xlu0 %185, %v43
  %v187 = vpop.permute.xlu0 %186
  %189 = vset.pattern.permute.xlu0 1
  %190 = vperm.xlu0 %189, %v44
  %v191 = vpop.permute.xlu0 %190
  %193 = vset.pattern.permute.xlu0 1
  %194 = vperm.xlu0 %193, %v45
  %v195 = vpop.permute.xlu0 %194
  %197 = vset.pattern.permute.xlu0 1
  %198 = vperm.xlu0 %197, %v46
  %v199 = vpop.permute.xlu0 %198
  %201 = vset.pattern.permute.xlu0 1
  %202 = vperm.xlu0 %201, %v47
  %v203 = vpop.permute.xlu0 %202
  %205 = vset.pattern.permute.xlu0 1
  %206 = vperm.xlu0 %205, %v48
  %v207 = vpop.permute.xlu0 %206
  %209 = vset.pattern.permute.xlu0 1
  %210 = vperm.xlu0 %209, %v49
  %v211 = vpop.permute.xlu0 %210
  %v213 = vperm.slane %v148, 0
  %v214 = vmul.f32 %v151, %v213
  %v215 = vmul.f32 %v155, %v213
  %v216 = vmul.f32 %v159, %v213
  %v217 = vmul.f32 %v163, %v213
  %v218 = vmul.f32 %v167, %v213
  %v219 = vmul.f32 %v171, %v213
  %v220 = vmul.f32 %v175, %v213
  %v221 = vmul.f32 %v179, %v213
  %v222 = vmul.f32 %v183, %v213
  %v223 = vmul.f32 %v187, %v213
  %v224 = vmul.f32 %v191, %v213
  %v225 = vmul.f32 %v195, %v213
  %v226 = vmul.f32 %v199, %v213
  %v227 = vmul.f32 %v203, %v213
  %v228 = vmul.f32 %v207, %v213
  %v229 = vmul.f32 %v211, %v213
  %v230 = vadd.f32 %v132, %v214
  %v231 = vadd.f32 %v133, %v215
  %v232 = vadd.f32 %v134, %v216
  %v233 = vadd.f32 %v135, %v217
  %v234 = vadd.f32 %v136, %v218
  %v235 = vadd.f32 %v137, %v219
  %v236 = vadd.f32 %v138, %v220
  %v237 = vadd.f32 %v139, %v221
  %v238 = vadd.f32 %v140, %v222
  %v239 = vadd.f32 %v141, %v223
  %v240 = vadd.f32 %v142, %v224
  %v241 = vadd.f32 %v143, %v225
  %v242 = vadd.f32 %v144, %v226
  %v243 = vadd.f32 %v145, %v227
  %v244 = vadd.f32 %v146, %v228
  %v245 = vadd.f32 %v147, %v229
  %v246 = vld [vmem:[%s2] sm:$0xff]
  %v247 = vld [vmem:[%s2 + $0x8] sm:$0xff]
  %v248 = vld [vmem:[%s2 + $0x10] sm:$0xff]
  %v249 = vld [vmem:[%s2 + $0x18] sm:$0xff]
  %v250 = vld [vmem:[%s2 + $0x20] sm:$0xff]
  %v251 = vld [vmem:[%s2 + $0x28] sm:$0xff]
  %v252 = vld [vmem:[%s2 + $0x30] sm:$0xff]
  %v253 = vld [vmem:[%s2 + $0x38] sm:$0xff]
  %v254 = vld [vmem:[%s2 + $0x40] sm:$0xff]
  %v255 = vld [vmem:[%s2 + $0x48] sm:$0xff]
  %v256 = vld [vmem:[%s2 + $0x50] sm:$0xff]
  %v257 = vld [vmem:[%s2 + $0x58] sm:$0xff]
  %v258 = vld [vmem:[%s2 + $0x60] sm:$0xff]
  %v259 = vld [vmem:[%s2 + $0x68] sm:$0xff]
  %v260 = vld [vmem:[%s2 + $0x70] sm:$0xff]
  %v261 = vld [vmem:[%s2 + $0x78] sm:$0xff]
  %263 = vset.pattern.permute.xlu0 0
  %264 = vperm.xlu0 %263, %v246
  %v265 = vpop.permute.xlu0 %264
  %268 = vset.pattern.permute.xlu0 0
  %269 = vperm.xlu0 %268, %v247
  %v270 = vpop.permute.xlu0 %269
  %273 = vset.pattern.permute.xlu0 0
  %274 = vperm.xlu0 %273, %v248
  %v275 = vpop.permute.xlu0 %274
  %278 = vset.pattern.permute.xlu0 0
  %279 = vperm.xlu0 %278, %v249
  %v280 = vpop.permute.xlu0 %279
  %283 = vset.pattern.permute.xlu0 0
  %284 = vperm.xlu0 %283, %v250
  %v285 = vpop.permute.xlu0 %284
  %288 = vset.pattern.permute.xlu0 0
  %289 = vperm.xlu0 %288, %v251
  %v290 = vpop.permute.xlu0 %289
  %293 = vset.pattern.permute.xlu0 0
  %294 = vperm.xlu0 %293, %v252
  %v295 = vpop.permute.xlu0 %294
  %298 = vset.pattern.permute.xlu0 0
  %299 = vperm.xlu0 %298, %v253
  %v300 = vpop.permute.xlu0 %299
  %303 = vset.pattern.permute.xlu0 0
  %304 = vperm.xlu0 %303, %v254
  %v305 = vpop.permute.xlu0 %304
  %308 = vset.pattern.permute.xlu0 0
  %309 = vperm.xlu0 %308, %v255
  %v310 = vpop.permute.xlu0 %309
  %313 = vset.pattern.permute.xlu0 0
  %314 = vperm.xlu0 %313, %v256
  %v315 = vpop.permute.xlu0 %314
  %318 = vset.pattern.permute.xlu0 0
  %319 = vperm.xlu0 %318, %v257
  %v320 = vpop.permute.xlu0 %319
  %323 = vset.pattern.permute.xlu0 0
  %324 = vperm.xlu0 %323, %v258
  %v325 = vpop.permute.xlu0 %324
  %328 = vset.pattern.permute.xlu0 0
  %329 = vperm.xlu0 %328, %v259
  %v330 = vpop.permute.xlu0 %329
  %333 = vset.pattern.permute.xlu0 0
  %334 = vperm.xlu0 %333, %v260
  %v335 = vpop.permute.xlu0 %334
  %338 = vset.pattern.permute.xlu0 0
  %339 = vperm.xlu0 %338, %v261
  %v340 = vpop.permute.xlu0 %339
  %v342 = vadd.f32 %v230, %v265
  %v343 = vadd.f32 %v231, %v270
  %v344 = vadd.f32 %v232, %v275
  %v345 = vadd.f32 %v233, %v280
  %v346 = vadd.f32 %v234, %v285
  %v347 = vadd.f32 %v235, %v290
  %v348 = vadd.f32 %v236, %v295
  %v349 = vadd.f32 %v237, %v300
  %v350 = vadd.f32 %v238, %v305
  %v351 = vadd.f32 %v239, %v310
  %v352 = vadd.f32 %v240, %v315
  %v353 = vadd.f32 %v241, %v320
  %v354 = vadd.f32 %v242, %v325
  %v355 = vadd.f32 %v243, %v330
  %v356 = vadd.f32 %v244, %v335
  %v357 = vadd.f32 %v245, %v340
  %v358 = vmax.f32 %v342, 0.0
  %v359 = vmax.f32 %v343, 0.0
  %v360 = vmax.f32 %v344, 0.0
  %v361 = vmax.f32 %v345, 0.0
  %v362 = vmax.f32 %v346, 0.0
  %v363 = vmax.f32 %v347, 0.0
  %v364 = vmax.f32 %v348, 0.0
  %v365 = vmax.f32 %v349, 0.0
  %v366 = vmax.f32 %v350, 0.0
  %v367 = vmax.f32 %v351, 0.0
  %v368 = vmax.f32 %v352, 0.0
  %v369 = vmax.f32 %v353, 0.0
  %v370 = vmax.f32 %v354, 0.0
  %v371 = vmax.f32 %v355, 0.0
  %v372 = vmax.f32 %v356, 0.0
  %v373 = vmax.f32 %v357, 0.0
  %v374 = vpack.c.bf16 %v359, %v358
  %v375 = vpack.c.bf16 %v361, %v360
  %v376 = vpack.c.bf16 %v363, %v362
  %v377 = vpack.c.bf16 %v365, %v364
  %v378 = vpack.c.bf16 %v367, %v366
  %v379 = vpack.c.bf16 %v369, %v368
  %v380 = vpack.c.bf16 %v371, %v370
  %v381 = vpack.c.bf16 %v373, %v372
  %382 = vxpose.xlu0.c.b16.start [1/8] %v374, 128
  %383 = vxpose.xlu0.c.b16.cont [2/8] %v375, 128
  %384 = vxpose.xlu0.c.b16.cont [3/8] %v376, 128
  %385 = vxpose.xlu0.c.b16.cont [4/8] %v377, 128
  %386 = vxpose.xlu0.c.b16.cont [5/8] %v378, 128
  %387 = vxpose.xlu0.c.b16.cont [6/8] %v379, 128
  %388 = vxpose.xlu0.c.b16.cont [7/8] %v380, 128
  %389 = vxpose.xlu0.c.b16.end [8/8] %v381, 128
  %v390 = vpop.trf.xlu0
  %v391 = vpop.trf.xlu0
  %v392 = vpop.trf.xlu0
  %v393 = vpop.trf.xlu0
  %v394 = vpop.trf.xlu0
  %v395 = vpop.trf.xlu0
  %v396 = vpop.trf.xlu0
  %v397 = vpop.trf.xlu0
  %v398 = vld [vmem:[%s3] sm:$0xf]
  %v399 = vld [vmem:[%s3 + $0x4] sm:$0xf]
  %v400 = vld [vmem:[%s3 + $0x8] sm:$0xf]
  %v401 = vld [vmem:[%s3 + $0xc] sm:$0xf]
  %v402 = vld [vmem:[%s3 + $0x10] sm:$0xf]
  %v403 = vld [vmem:[%s3 + $0x14] sm:$0xf]
  %v404 = vld [vmem:[%s3 + $0x18] sm:$0xf]
  %v405 = vld [vmem:[%s3 + $0x1c] sm:$0xf]
  %v406 = vld [vmem:[%s3 + $0x20] sm:$0xf]
  %v407 = vld [vmem:[%s3 + $0x24] sm:$0xf]
  %v408 = vld [vmem:[%s3 + $0x28] sm:$0xf]
  %v409 = vld [vmem:[%s3 + $0x2c] sm:$0xf]
  %v410 = vld [vmem:[%s3 + $0x30] sm:$0xf]
  %v411 = vld [vmem:[%s3 + $0x34] sm:$0xf]
  %v412 = vld [vmem:[%s3 + $0x38] sm:$0xf]
  %v413 = vld [vmem:[%s3 + $0x3c] sm:$0xf]
  %v414 = vld [vmem:[%s4] sm:$0x1]
  %v416 = vperm.slane %v414, 0
  %v434 = vunpack.c.l.b16 %v398
  %v435 = vunpack.c.l.b16 %v399
  %v436 = vunpack.c.l.b16 %v400
  %v437 = vunpack.c.l.b16 %v401
  %v438 = vunpack.c.l.b16 %v402
  %v439 = vunpack.c.l.b16 %v403
  %v440 = vunpack.c.l.b16 %v404
  %v441 = vunpack.c.l.b16 %v405
  %v442 = vunpack.c.l.b16 %v406
  %v443 = vunpack.c.l.b16 %v407
  %v444 = vunpack.c.l.b16 %v408
  %v445 = vunpack.c.l.b16 %v409
  %v446 = vunpack.c.l.b16 %v410
  %v447 = vunpack.c.l.b16 %v411
  %v448 = vunpack.c.l.b16 %v412
  %v449 = vunpack.c.l.b16 %v413
  %v450 = vpack.c.b16 %v435, %v434
  %v451 = vpack.c.b16 %v437, %v436
  %v452 = vpack.c.b16 %v439, %v438
  %v453 = vpack.c.b16 %v441, %v440
  %v454 = vpack.c.b16 %v443, %v442
  %v455 = vpack.c.b16 %v445, %v444
  %v456 = vpack.c.b16 %v447, %v446
  %v457 = vpack.c.b16 %v449, %v448
  %466 = vmatpush.bf16.msra.mxu0 %v457
  %467 = vmatpush.bf16.msra.mxu0 %v456
  %468 = vmatpush.bf16.msra.mxu0 %v455
  %469 = vmatpush.bf16.msra.mxu0 %v454
  %470 = vmatpush.bf16.msra.mxu0 %v453
  %471 = vmatpush.bf16.msra.mxu0 %v452
  %472 = vmatpush.bf16.msra.mxu0 %v451
  %473 = vmatpush.bf16.msra.mxu0 %v450
  %474 = vmatmul.bf16.gmra.mxu0 %v390
  %v475 = vpop.f32.mrf.mxu0
  %v476 = vadd.f32 %v416, %v475
  %v477 = vpop.f32.mrf.mxu0
  %v478 = vadd.f32 %v416, %v477
  %479 = vdwg.mxu0
  %v480 = vmax.f32 %v476, 0.0
  %v481 = vmax.f32 %v478, 0.0
  %v482 = vrot.slane %v480, 4
  %v483 = vadd.f32 %v480, %v482
  %v484 = vrot.slane %v483, 2
  %v485 = vadd.f32 %v483, %v484
  %v486 = vrot.slane %v485, 1
  %v487 = vadd.f32 %v485, %v486
  %v488 = vrot.slane %v481, 4
  %v489 = vadd.f32 %v481, %v488
  %v490 = vrot.slane %v489, 2
  %v491 = vadd.f32 %v489, %v490
  %v492 = vrot.slane %v491, 1
  %v493 = vadd.f32 %v491, %v492
  %v494 = vmul.f32 %v487, 0.125
  %v495 = vmul.f32 %v493, 0.125
  %v496 = vpack.c.bf16 %v494, %v494
  %v497 = vpack.c.bf16 %v495, %v495
  %v498 = vld [vmem:[%s5] sm:$0xf]
  %v499 = vld [vmem:[%s5 + $0x4] sm:$0xf]
  %v500 = vld [vmem:[%s5 + $0x8] sm:$0xf]
  %v501 = vld [vmem:[%s5 + $0xc] sm:$0xf]
  %v502 = vld [vmem:[%s5 + $0x10] sm:$0xf]
  %v503 = vld [vmem:[%s5 + $0x14] sm:$0xf]
  %v504 = vld [vmem:[%s5 + $0x18] sm:$0xf]
  %v505 = vld [vmem:[%s5 + $0x1c] sm:$0xf]
  %v506 = vld [vmem:[%s5 + $0x20] sm:$0xf]
  %v507 = vld [vmem:[%s5 + $0x24] sm:$0xf]
  %v508 = vld [vmem:[%s5 + $0x28] sm:$0xf]
  %v509 = vld [vmem:[%s5 + $0x2c] sm:$0xf]
  %v510 = vld [vmem:[%s5 + $0x30] sm:$0xf]
  %v511 = vld [vmem:[%s5 + $0x34] sm:$0xf]
  %v512 = vld [vmem:[%s5 + $0x38] sm:$0xf]
  %v513 = vld [vmem:[%s5 + $0x3c] sm:$0xf]
  %v514 = vld [vmem:[%s6] sm:$0x1]
  %v516 = vperm.slane %v514, 0
  %v520 = vunpack.c.l.b16 %v496
  %v521 = vunpack.c.l.b16 %v497
  %vm522 = vcmask 1041409
  %v523 = vsel %vm522, %v521, %v520
  %v524 = vpack.c.b16 %v523, %v523
  %v542 = vunpack.c.l.b16 %v498
  %v543 = vunpack.c.l.b16 %v499
  %v544 = vunpack.c.l.b16 %v500
  %v545 = vunpack.c.l.b16 %v501
  %v546 = vunpack.c.l.b16 %v502
  %v547 = vunpack.c.l.b16 %v503
  %v548 = vunpack.c.l.b16 %v504
  %v549 = vunpack.c.l.b16 %v505
  %v550 = vunpack.c.l.b16 %v506
  %v551 = vunpack.c.l.b16 %v507
  %v552 = vunpack.c.l.b16 %v508
  %v553 = vunpack.c.l.b16 %v509
  %v554 = vunpack.c.l.b16 %v510
  %v555 = vunpack.c.l.b16 %v511
  %v556 = vunpack.c.l.b16 %v512
  %v557 = vunpack.c.l.b16 %v513
  %v558 = vpack.c.b16 %v543, %v542
  %v559 = vpack.c.b16 %v545, %v544
  %v560 = vpack.c.b16 %v547, %v546
  %v561 = vpack.c.b16 %v549, %v548
  %v562 = vpack.c.b16 %v551, %v550
  %v563 = vpack.c.b16 %v553, %v552
  %v564 = vpack.c.b16 %v555, %v554
  %v565 = vpack.c.b16 %v557, %v556
  %574 = vmatpush.bf16.msra.mxu0 %v565
  %575 = vmatpush.bf16.msra.mxu0 %v564
  %576 = vmatpush.bf16.msra.mxu0 %v563
  %577 = vmatpush.bf16.msra.mxu0 %v562
  %578 = vmatpush.bf16.msra.mxu0 %v561
  %579 = vmatpush.bf16.msra.mxu0 %v560
  %580 = vmatpush.bf16.msra.mxu0 %v559
  %581 = vmatpush.bf16.msra.mxu0 %v558
  %582 = vmatmul.bf16.gmra.mxu0 %v524
  %v583 = vpop.f32.mrf.mxu0
  %v584 = vadd.f32 %v516, %v583
  %v585 = vpop.f32.mrf.mxu0
  %586 = vdwg.mxu0
  %v587 = vmax.f32 %v584, 0.0
  %v588 = vld [vmem:[%s7] sm:$0x1]
  %v589 = vld [vmem:[#allocation2] sm:$0x1]
  %591 = vset.pattern.permute.xlu0 0
  %592 = vperm.xlu0 %591, %v589
  %v593 = vpop.permute.xlu0 %592
  %v595 = vperm.slane %v593, 0
  %596 = vmatpush.xpose.msra.mxu0 0.0
  %597 = vmatpush.xpose.msra.mxu0 0.0
  %598 = vmatpush.xpose.msra.mxu0 0.0
  %599 = vmatpush.xpose.msra.mxu0 0.0
  %600 = vmatpush.xpose.msra.mxu0 0.0
  %601 = vmatpush.xpose.msra.mxu0 0.0
  %602 = vmatpush.xpose.msra.mxu0 0.0
  %603 = vmatpush.xpose.msra.mxu0 0.0
  %604 = vmatpush.xpose.msra.mxu0 0.0
  %605 = vmatpush.xpose.msra.mxu0 0.0
  %606 = vmatpush.xpose.msra.mxu0 0.0
  %607 = vmatpush.xpose.msra.mxu0 0.0
  %608 = vmatpush.xpose.msra.mxu0 0.0
  %609 = vmatpush.xpose.msra.mxu0 0.0
  %610 = vmatpush.xpose.msra.mxu0 0.0
  %611 = vmatpush.xpose.msra.mxu0 %v587
  %612 = vmatmul.f32.gmra.mxu0 %v588
  %v613 = vpop.f32.mrf.mxu0
  %v614 = vadd.f32 %v595, %v613
  %615 = vdwg.mxu0
  %v616 = vperm.slane %v614, 0
  %vm617 = vcmask 15360
  %618 = vst.msk [vmem:[%s9] sm:$0xff] %vm617, %v616
  // Predicated region
  $region38: #{tpu_custom_call.1} parent=0 // pred_check
    _
  $region39: #{tpu_custom_call.1} parent=0 // pred_check_branch
    %620 = sbr.rel (0) target = $region41
  $region40: #{tpu_custom_call.1} parent=0 // pred_region
    _
  $region41: #{tpu_custom_call.1} parent=0 // pred_fallthru
    _
  // Predicated region
  $region42: #{tpu_custom_call.1} parent=0 // pred_check
    _
  $region43: #{tpu_custom_call.1} parent=0 // pred_check_branch
    %622 = sbr.rel (0) target = $region45
  $region44: #{tpu_custom_call.1} parent=0 // pred_region
    _
  $region45: #{tpu_custom_call.1} parent=0 // pred_fallthru
    _

</llo_original>
